<compile_context>
chip_gen: v7x
topology: tpu7x:2x2x1
jax: 0.10.0
libtpu: 0.0.40
codegen_flags: <defaults>
</compile_context>

<pallas_src>
import functools

import jax
import jax.numpy as jnp
from jax import lax
from jax.experimental import pallas as pl
from jax.experimental.pallas import tpu as pltpu


def _round_up(x: int, mult: int) -> int:
    return ((x + mult - 1) // mult) * mult


def _logsigmoid(x):
    # Numerically stable log(sigmoid(x)) = min(x, 0) - log1p(exp(-|x|))
    return jnp.minimum(x, 0.0) - jnp.log1p(jnp.exp(-jnp.abs(x)))


def _nce_kernel(ref_ref, pos_ref, neg_ref,        # inputs  (VMEM tiles)
                align_ref, unif_ref,              # outputs (resident over m)
                acc_ref,                          # VMEM scratch accumulator
                *, inv_temp, m_total, tm, reduce, mask_cols):
    j = pl.program_id(1)                          # m (reduction) index, innermost

    # --- init / positive-pair work: only once per n tile -------------------
    @pl.when(j == 0)
    def _init():
        r = ref_ref[...].astype(jnp.float32)      # (bn, d)
        p = pos_ref[...].astype(jnp.float32)      # (bn, d)
        pos_dist = jnp.sum(r * p, axis=1, keepdims=True) * inv_temp
        align_ref[...] = _logsigmoid(pos_dist)    # (bn, 1)
        acc_ref[...] = jnp.zeros_like(acc_ref)

    # --- streamed negative tile: (bn, d) x (tm, d)^T -> (bn, tm) ------------
    neg_dist = lax.dot_general(
        ref_ref[...], neg_ref[...],
        dimension_numbers=(((1,), (1,)), ((), ())),
        preferred_element_type=jnp.float32,
    ) * inv_temp

    neg_ls = _logsigmoid(-neg_dist)               # (bn, tm) f32

    if mask_cols:
        # Mask columns coming from m-padding so they don't pollute the sum.
        col = lax.broadcasted_iota(jnp.int32, neg_ls.shape, 1) + j * tm
        neg_ls = jnp.where(col < m_total, neg_ls, 0.0)

    acc_ref[...] += jnp.sum(neg_ls, axis=1, keepdims=True)

    # --- finalize at the last m tile ----------------------------------------
    @pl.when(j == pl.num_programs(1) - 1)
    def _finalize():
        u = acc_ref[...]
        if reduce == 'mean':
            u = u * jnp.float32(1.0 / m_total)
        unif_ref[...] = u


def nce_loss(ref, pos, neg, *, temperature=1.0, negative_weight=1.0,
             reduce='mean'):
    """Pallas NCE loss. ref/pos: (n, d), neg: (m, d).

    Returns (loss, align, uniform), each of shape (n,) in float32.
    """
    assert reduce in ('mean', 'sum')
    n, d = ref.shape
    m, d2 = neg.shape
    assert pos.shape == (n, d) and d2 == d

    # Tile sizes: sublane-aligned n tile, lane/MXU-aligned m tile. Sized so the
    # double-buffered working set stays far below the scoped-VMEM default
    # (32 MiB) for typical CEBRA feature dims.
    bn = min(256, _round_up(n, 8))
    tm = min(512, _round_up(m, 128))
    n_pad = _round_up(n, bn)
    m_pad = _round_up(m, tm)

    if n_pad != n:
        pad_n = ((0, n_pad - n), (0, 0))
        ref_p = jnp.pad(ref, pad_n)
        pos_p = jnp.pad(pos, pad_n)
    else:
        ref_p, pos_p = ref, pos
    neg_p = jnp.pad(neg, ((0, m_pad - m), (0, 0))) if m_pad != m else neg

    grid = (n_pad // bn, m_pad // tm)

    kernel = functools.partial(
        _nce_kernel,
        inv_temp=float(1.0 / temperature),
        m_total=m,
        tm=tm,
        reduce=reduce,
        mask_cols=(m_pad != m),
    )

    itemsize = jnp.dtype(ref.dtype).itemsize
    cost = pl.CostEstimate(
        flops=int(2 * n * m * d + 2 * n * d),
        transcendentals=int(2 * n * m + 2 * n),
        bytes_accessed=int((2 * n * d + m * d) * itemsize + 2 * n * 4),
    )

    align, uniform = pl.pallas_call(
        kernel,
        out_shape=(
            jax.ShapeDtypeStruct((n_pad, 1), jnp.float32),
            jax.ShapeDtypeStruct((n_pad, 1), jnp.float32),
        ),
        grid=grid,
        in_specs=[
            pl.BlockSpec((bn, d), lambda i, j: (i, 0)),   # ref: per-n tile
            pl.BlockSpec((bn, d), lambda i, j: (i, 0)),   # pos: per-n tile
            pl.BlockSpec((tm, d), lambda i, j: (j, 0)),   # neg: per-m tile
        ],
        out_specs=[
            pl.BlockSpec((bn, 1), lambda i, j: (i, 0)),   # align (resident over m)
            pl.BlockSpec((bn, 1), lambda i, j: (i, 0)),   # uniform (resident over m)
        ],
        scratch_shapes=[pltpu.VMEM((bn, 1), jnp.float32)],
        compiler_params=pltpu.CompilerParams(
            dimension_semantics=("parallel", "arbitrary")),
        cost_estimate=cost,
    )(ref_p, pos_p, neg_p)

    align = align[:n, 0]
    uniform = uniform[:n, 0]
    loss = align + jnp.float32(negative_weight) * uniform
    return loss, align, uniform


def _nce_ref(ref, pos, neg, *, temperature=1.0, negative_weight=1.0,
             reduce='mean'):
    """Pure-JAX reference for verification."""
    pos_dist = jnp.sum(ref * pos, axis=1) / temperature
    neg_dist = ref @ neg.T / temperature
    align = jax.nn.log_sigmoid(pos_dist)
    neg_ls = jax.nn.log_sigmoid(-neg_dist)
    uniform = jnp.mean(neg_ls, axis=1) if reduce == 'mean' else jnp.sum(neg_ls, axis=1)
    return align + negative_weight * uniform, align, uniform


if __name__ == "__main__":
    key = jax.random.PRNGKey(0)
    k1, k2, k3, k4, k5, k6 = jax.random.split(key, 6)

    # --- check 1: small aligned-ish shapes, default params -------------------
    n, m, d = 8, 16, 32
    ref = jax.random.normal(k1, (n, d), dtype=jnp.float32)
    pos = jax.random.normal(k2, (n, d), dtype=jnp.float32)
    neg = jax.random.normal(k3, (m, d), dtype=jnp.float32)

    loss, align, uniform = nce_loss(ref, pos, neg,
                                    temperature=1.0,
                                    negative_weight=1.0,
                                    reduce='mean')
    jax.block_until_ready((loss, align, uniform))

    loss_r, align_r, unif_r = _nce_ref(ref, pos, neg,
                                       temperature=1.0,
                                       negative_weight=1.0,
                                       reduce='mean')
    assert jnp.allclose(loss, loss_r, atol=1e-5, rtol=1e-5)
    assert jnp.allclose(align, align_r, atol=1e-5, rtol=1e-5)
    assert jnp.allclose(uniform, unif_r, atol=1e-5, rtol=1e-5)

    # --- check 2: ragged shapes (exercise n/m padding + masking), sum reduce --
    n2, m2, d2 = 10, 40, 24
    ref2 = jax.random.normal(k4, (n2, d2), dtype=jnp.float32)
    pos2 = jax.random.normal(k5, (n2, d2), dtype=jnp.float32)
    neg2 = jax.random.normal(k6, (m2, d2), dtype=jnp.float32)

    loss2, align2, unif2 = nce_loss(ref2, pos2, neg2,
                                    temperature=0.5,
                                    negative_weight=2.0,
                                    reduce='sum')
    jax.block_until_ready((loss2, align2, unif2))

    loss2_r, align2_r, unif2_r = _nce_ref(ref2, pos2, neg2,
                                          temperature=0.5,
                                          negative_weight=2.0,
                                          reduce='sum')
    assert jnp.allclose(loss2, loss2_r, atol=1e-4, rtol=1e-4)
    assert jnp.allclose(align2, align2_r, atol=1e-5, rtol=1e-5)
    assert jnp.allclose(unif2, unif2_r, atol=1e-4, rtol=1e-4)

    print("KERNEL_OK")
</pallas_src>

<mosaic_0001>
module attributes {stable_mosaic.version = 11 : i64} {
  func.func @_nce_kernel(%arg0: i32, %arg1: i32, %arg2: memref<8x32xf32, #tpu.memory_space<vmem>>, %arg3: memref<8x32xf32, #tpu.memory_space<vmem>>, %arg4: memref<128x32xf32, #tpu.memory_space<vmem>>, %arg5: memref<8x1xf32, #tpu.memory_space<vmem>>, %arg6: memref<8x1xf32, #tpu.memory_space<vmem>>, %arg7: memref<8x1xf32, #tpu.memory_space<vmem>>) attributes {dimension_semantics = [#tpu.dimension_semantics<parallel>, #tpu.dimension_semantics<arbitrary>], iteration_bounds = array<i64: 1, 1>, scalar_prefetch = 0 : i64, scratch_operands = 1 : i64, tpu.core_type = #tpu.core_type<tc>, window_params = [{transform_indices = @transform_0, window_bounds = array<i64: 8, 32>}, {transform_indices = @transform_1, window_bounds = array<i64: 8, 32>}, {transform_indices = @transform_2, window_bounds = array<i64: 128, 32>}, {transform_indices = @transform_3, window_bounds = array<i64: 8, 1>}, {transform_indices = @transform_4, window_bounds = array<i64: 8, 1>}]} {
    %c0_i32 = arith.constant 0 : i32
    %0 = arith.cmpi eq, %arg1, %c0_i32 : i32
    %1 = arith.extui %0 : i1 to i32
    %c0_i32_0 = arith.constant 0 : i32
    %2 = arith.cmpi ne, %1, %c0_i32_0 : i32
    scf.if %2 {
      %c0_16 = arith.constant 0 : index
      %c0_17 = arith.constant 0 : index
      %34 = vector.load %arg2[%c0_16, %c0_17] : memref<8x32xf32, #tpu.memory_space<vmem>>, vector<8x32xf32>
      %c0_18 = arith.constant 0 : index
      %c0_19 = arith.constant 0 : index
      %35 = vector.load %arg3[%c0_18, %c0_19] : memref<8x32xf32, #tpu.memory_space<vmem>>, vector<8x32xf32>
      %36 = arith.mulf %34, %35 : vector<8x32xf32>
      %cst_20 = arith.constant dense<0.000000e+00> : vector<8xf32>
      %37 = vector.multi_reduction <add>, %36, %cst_20 [1] : vector<8x32xf32> to vector<8xf32>
      %38 = vector.shape_cast %37 : vector<8xf32> to vector<8x1xf32>
      %cst_21 = arith.constant 1.000000e+00 : f32
      %39 = vector.broadcast %cst_21 : f32 to vector<8x1xf32>
      %40 = arith.mulf %38, %39 : vector<8x1xf32>
      %cst_22 = arith.constant 0.000000e+00 : f32
      %41 = vector.broadcast %cst_22 : f32 to vector<8x1xf32>
      %42 = arith.minimumf %40, %41 : vector<8x1xf32>
      %43 = math.absf %40 : vector<8x1xf32>
      %cst_23 = arith.constant 0.000000e+00 : f32
      %44 = vector.broadcast %cst_23 : f32 to vector<8x1xf32>
      %45 = arith.subf %44, %43 : vector<8x1xf32>
      %46 = math.exp %45 : vector<8x1xf32>
      %47 = math.log1p %46 : vector<8x1xf32>
      %48 = arith.subf %42, %47 : vector<8x1xf32>
      %c0_24 = arith.constant 0 : index
      %c0_25 = arith.constant 0 : index
      %49 = vector.load %arg5[%c0_24, %c0_25] : memref<8x1xf32, #tpu.memory_space<vmem>>, vector<8x1xf32>
      tpu.vector_store %arg5[%c0_24, %c0_25], %48 {strides = array<i32>} : memref<8x1xf32, #tpu.memory_space<vmem>>, vector<8x1xf32>,
      %cst_26 = arith.constant 0.000000e+00 : f32
      %50 = vector.broadcast %cst_26 : f32 to vector<8x1xf32>
      %c0_27 = arith.constant 0 : index
      %c0_28 = arith.constant 0 : index
      %51 = vector.load %arg7[%c0_27, %c0_28] : memref<8x1xf32, #tpu.memory_space<vmem>>, vector<8x1xf32>
      tpu.vector_store %arg7[%c0_27, %c0_28], %50 {strides = array<i32>} : memref<8x1xf32, #tpu.memory_space<vmem>>, vector<8x1xf32>,
    } else {
    }
    %c0 = arith.constant 0 : index
    %c0_1 = arith.constant 0 : index
    %3 = vector.load %arg2[%c0, %c0_1] : memref<8x32xf32, #tpu.memory_space<vmem>>, vector<8x32xf32>
    %c0_2 = arith.constant 0 : index
    %c0_3 = arith.constant 0 : index
    %4 = vector.load %arg4[%c0_2, %c0_3] : memref<128x32xf32, #tpu.memory_space<vmem>>, vector<128x32xf32>
    %cst = arith.constant dense<0.000000e+00> : vector<8x128xf32>
    %5 = tpu.matmul %3, %4, %cst {dimension_numbers = #tpu.dot_dimension_numbers<[1], [1], [0], [0], [0, 0, 1, 0], [], []>} : vector<8x32xf32>, vector<128x32xf32>, vector<8x128xf32> -> vector<8x128xf32>
    %cst_4 = arith.constant 1.000000e+00 : f32
    %6 = vector.broadcast %cst_4 : f32 to vector<8x128xf32>
    %7 = arith.mulf %5, %6 : vector<8x128xf32>
    %cst_5 = arith.constant 0.000000e+00 : f32
    %8 = vector.broadcast %cst_5 : f32 to vector<8x128xf32>
    %9 = arith.subf %8, %7 : vector<8x128xf32>
    %cst_6 = arith.constant 0.000000e+00 : f32
    %10 = vector.broadcast %cst_6 : f32 to vector<8x128xf32>
    %11 = arith.minimumf %9, %10 : vector<8x128xf32>
    %12 = math.absf %9 : vector<8x128xf32>
    %cst_7 = arith.constant 0.000000e+00 : f32
    %13 = vector.broadcast %cst_7 : f32 to vector<8x128xf32>
    %14 = arith.subf %13, %12 : vector<8x128xf32>
    %15 = math.exp %14 : vector<8x128xf32>
    %16 = math.log1p %15 : vector<8x128xf32>
    %17 = arith.subf %11, %16 : vector<8x128xf32>
    %18 = tpu.iota {dimensions = array<i32: 1>} : vector<8x128xi32>
    %c128_i32 = arith.constant 128 : i32
    %19 = arith.muli %arg1, %c128_i32 : i32
    %20 = vector.broadcast %19 : i32 to vector<8x128xi32>
    %21 = arith.addi %18, %20 : vector<8x128xi32>
    %c16_i32 = arith.constant 16 : i32
    %22 = vector.broadcast %c16_i32 : i32 to vector<8x128xi32>
    %23 = arith.cmpi slt, %21, %22 : vector<8x128xi32>
    %cst_8 = arith.constant 0.000000e+00 : f32
    %24 = vector.broadcast %cst_8 : f32 to vector<8x128xf32>
    %25 = arith.select %23, %17, %24 : vector<8x128xi1>, vector<8x128xf32>
    %c0_9 = arith.constant 0 : index
    %c0_10 = arith.constant 0 : index
    %26 = vector.load %arg7[%c0_9, %c0_10] : memref<8x1xf32, #tpu.memory_space<vmem>>, vector<8x1xf32>
    %cst_11 = arith.constant dense<0.000000e+00> : vector<8xf32>
    %27 = vector.multi_reduction <add>, %25, %cst_11 [1] : vector<8x128xf32> to vector<8xf32>
    %28 = vector.shape_cast %27 : vector<8xf32> to vector<8x1xf32>
    %29 = arith.addf %26, %28 : vector<8x1xf32>
    %c0_12 = arith.constant 0 : index
    %c0_13 = arith.constant 0 : index
    %30 = vector.load %arg7[%c0_12, %c0_13] : memref<8x1xf32, #tpu.memory_space<vmem>>, vector<8x1xf32>
    tpu.vector_store %arg7[%c0_12, %c0_13], %29 {strides = array<i32>} : memref<8x1xf32, #tpu.memory_space<vmem>>, vector<8x1xf32>,
    %c0_i32_14 = arith.constant 0 : i32
    %31 = arith.cmpi eq, %arg1, %c0_i32_14 : i32
    %32 = arith.extui %31 : i1 to i32
    %c0_i32_15 = arith.constant 0 : i32
    %33 = arith.cmpi ne, %32, %c0_i32_15 : i32
    scf.if %33 {
      %c0_16 = arith.constant 0 : index
      %c0_17 = arith.constant 0 : index
      %34 = vector.load %arg7[%c0_16, %c0_17] : memref<8x1xf32, #tpu.memory_space<vmem>>, vector<8x1xf32>
      %cst_18 = arith.constant 6.250000e-02 : f32
      %35 = vector.broadcast %cst_18 : f32 to vector<8x1xf32>
      %36 = arith.mulf %34, %35 : vector<8x1xf32>
      %c0_19 = arith.constant 0 : index
      %c0_20 = arith.constant 0 : index
      %37 = vector.load %arg6[%c0_19, %c0_20] : memref<8x1xf32, #tpu.memory_space<vmem>>, vector<8x1xf32>
      tpu.vector_store %arg6[%c0_19, %c0_20], %36 {strides = array<i32>} : memref<8x1xf32, #tpu.memory_space<vmem>>, vector<8x1xf32>,
    } else {
    }
    return
  }
  func.func @transform_0(%arg0: i32, %arg1: i32) -> (i32, i32) {
    %c0_i32 = arith.constant 0 : i32
    %c0_i32_0 = arith.constant 0 : i32
    return %arg0, %c0_i32 : i32, i32
  }
  func.func @transform_1(%arg0: i32, %arg1: i32) -> (i32, i32) {
    %c0_i32 = arith.constant 0 : i32
    %c0_i32_0 = arith.constant 0 : i32
    return %arg0, %c0_i32 : i32, i32
  }
  func.func @transform_2(%arg0: i32, %arg1: i32) -> (i32, i32) {
    %c0_i32 = arith.constant 0 : i32
    %c0_i32_0 = arith.constant 0 : i32
    return %arg1, %c0_i32 : i32, i32
  }
  func.func @transform_3(%arg0: i32, %arg1: i32) -> (i32, i32) {
    %c0_i32 = arith.constant 0 : i32
    %c0_i32_0 = arith.constant 0 : i32
    return %arg0, %c0_i32 : i32, i32
  }
  func.func @transform_4(%arg0: i32, %arg1: i32) -> (i32, i32) {
    %c0_i32 = arith.constant 0 : i32
    %c0_i32_0 = arith.constant 0 : i32
    return %arg0, %c0_i32 : i32, i32
  }
}

</mosaic_0001>

<llo_original>
// kernel: tpu_custom_call.1
$region0: #{tpu_custom_call.1}
  #allocation0 [shape = 'u32[]', space=smem, size = 0x4, offset = 0x4, fixed_abs, tag = 'smem constant byte address 0x4 - core index']
  #allocation1 [shape = 'u32[144,128]{1,0:T(1,128)}', space=vmem, size = 0x12000, scoped, tag = 'internal scratch']
  #allocation2 [shape = 'f32[8,1]{1,0:T(8,128)}', space=vmem, size = 0x1000, scoped, tag = 'scratch operand']
  %s0 = inlined_call_operand.vmem [shape: f32[8,32], index: 0, kind: input, shape index: {}]
  %s1 = inlined_call_operand.vmem [shape: f32[8,32], index: 1, kind: input, shape index: {}]
  %s2 = inlined_call_operand.vmem [shape: f32[128,32], index: 2, kind: input, shape index: {}]
  %s3 = inlined_call_operand.vmem [shape: f32[8,1], index: 3, kind: output, shape index: {0}]
  %s4 = inlined_call_operand.vmem [shape: f32[8,1], index: 4, kind: output, shape index: {1}]
  %5 = xla_tuple %s3, %s4
  %s6 = sld [smem:[#allocation0]]
  $region38: #{tpu_custom_call.1} parent=0
    _
  %s8 = ssub.s32 1, %s6
  %s9 = scalar_select 0, %s8, %s6
  // Predicated region
  $region2: #{tpu_custom_call.1} parent=0 // pred_check
    _
  $region3: #{tpu_custom_call.1} parent=0 // pred_check_branch
    %11 = sbr.rel (0) target = $region5
  $region4: #{tpu_custom_call.1} parent=0 // pred_region
    _
  $region5: #{tpu_custom_call.1} parent=0 // pred_fallthru
    _
  // Predicated region
  $region6: #{tpu_custom_call.1} parent=0 // pred_check
    _
  $region7: #{tpu_custom_call.1} parent=0 // pred_check_branch
    %13 = sbr.rel (0) target = $region9
  $region8: #{tpu_custom_call.1} parent=0 // pred_region
    _
  $region9: #{tpu_custom_call.1} parent=0 // pred_fallthru
    _
  // Predicated region
  $region10: #{tpu_custom_call.1} parent=0 // pred_check
    _
  $region11: #{tpu_custom_call.1} parent=0 // pred_check_branch
    %15 = sbr.rel (0) target = $region13
  $region12: #{tpu_custom_call.1} parent=0 // pred_region
    _
  $region13: #{tpu_custom_call.1} parent=0 // pred_fallthru
    _
  %p16 = scmp.eq.s32.totalorder 0, 0
  // Predicated region
  $region14: #{tpu_custom_call.1} parent=0 // pred_check
    %p17 = pneg %p16
  $region15: #{tpu_custom_call.1} parent=0 // pred_check_branch
    %19 = sbr.rel (%p17) target = $region17
  $region16: #{tpu_custom_call.1} parent=0 // pred_region
    %v20 = vld [vmem:[%s0] sm:$0xff]
    %v21 = vld [vmem:[%s1] sm:$0xff]
    %v22 = vmul.f32 %v20, %v21
    %vm23 = vcmask 261120
    %v24 = vsel %vm23, %v22, 0.0
    %25 = vadd.xlane.f32.xlu0 %v24
    %v26 = vpop.xlane.xlu0 %25
    %v27 = vmin.f32 %v26, 0.0
    %v28 = vand.u32 2147483647, %v26
    %v29 = vsub.f32 0.0, %v28
    %v30 = vmul.f32 %v29, 1.442695
    %v31 = vpow.pop %v30
    %v32 = vadd.f32 %v31, 1.0
    %v33 = vlog2.pop %v32
    %v34 = vmul.f32 %v33, 0.6931472
    %v35 = vmul.f32 -0.5, %v31
    %v36 = vadd.f32 %v35, 1.0
    %v37 = vmul.f32 %v36, %v31
    %v38 = vand.u32 2147483647, %v31
    %vm39 = vcmp.lt.f32.partialorder %v38, 0.0004427343
    %v40 = vsel %vm39, %v37, %v34
    %v41 = vsub.f32 %v27, %v40
    %vm42 = vcmask 7168
    %43 = vst.msk [vmem:[%s3] sm:$0xff] %vm42, %v41
    %44 = vst.msk [vmem:[#allocation2] sm:$0xff] %vm42, 0.0
  $region17: #{tpu_custom_call.1} parent=0 // pred_fallthru
    _
  %v45 = vld [vmem:[%s0] sm:$0xff]
  %v46 = vld [vmem:[%s2] sm:$0xff]
  %v47 = vld [vmem:[%s2 + $0x8] sm:$0xff]
  %v48 = vld [vmem:[%s2 + $0x10] sm:$0xff]
  %v49 = vld [vmem:[%s2 + $0x18] sm:$0xff]
  %v50 = vld [vmem:[%s2 + $0x20] sm:$0xff]
  %v51 = vld [vmem:[%s2 + $0x28] sm:$0xff]
  %v52 = vld [vmem:[%s2 + $0x30] sm:$0xff]
  %v53 = vld [vmem:[%s2 + $0x38] sm:$0xff]
  %v54 = vld [vmem:[%s2 + $0x40] sm:$0xff]
  %v55 = vld [vmem:[%s2 + $0x48] sm:$0xff]
  %v56 = vld [vmem:[%s2 + $0x50] sm:$0xff]
  %v57 = vld [vmem:[%s2 + $0x58] sm:$0xff]
  %v58 = vld [vmem:[%s2 + $0x60] sm:$0xff]
  %v59 = vld [vmem:[%s2 + $0x68] sm:$0xff]
  %v60 = vld [vmem:[%s2 + $0x70] sm:$0xff]
  %v61 = vld [vmem:[%s2 + $0x78] sm:$0xff]
  %vm62 = vcmask 261120
  %v64 = vsel %vm62, %v45, 0
  %v67 = vsel %vm62, %v46, 0
  %v70 = vsel %vm62, %v47, 0
  %v73 = vsel %vm62, %v48, 0
  %v76 = vsel %vm62, %v49, 0
  %v79 = vsel %vm62, %v50, 0
  %v82 = vsel %vm62, %v51, 0
  %v85 = vsel %vm62, %v52, 0
  %v88 = vsel %vm62, %v53, 0
  %v91 = vsel %vm62, %v54, 0
  %v94 = vsel %vm62, %v55, 0
  %v97 = vsel %vm62, %v56, 0
  %v100 = vsel %vm62, %v57, 0
  %v103 = vsel %vm62, %v58, 0
  %v106 = vsel %vm62, %v59, 0
  %v109 = vsel %vm62, %v60, 0
  %v112 = vsel %vm62, %v61, 0
  %114 = vmatprep.subr.mxu0 0.0
  %115 = vmatpush1.xpose.msra.mxu0 %v67
  %116 = vmatprep.subr.mxu0 0.0
  %117 = vmatpush1.xpose.msra.mxu0 %v70
  %118 = vmatprep.subr.mxu0 0.0
  %119 = vmatpush1.xpose.msra.mxu0 %v73
  %120 = vmatprep.subr.mxu0 0.0
  %121 = vmatpush1.xpose.msra.mxu0 %v76
  %122 = vmatprep.subr.mxu0 0.0
  %123 = vmatpush1.xpose.msra.mxu0 %v79
  %124 = vmatprep.subr.mxu0 0.0
  %125 = vmatpush1.xpose.msra.mxu0 %v82
  %126 = vmatprep.subr.mxu0 0.0
  %127 = vmatpush1.xpose.msra.mxu0 %v85
  %128 = vmatprep.subr.mxu0 0.0
  %129 = vmatpush1.xpose.msra.mxu0 %v88
  %130 = vmatprep.subr.mxu0 0.0
  %131 = vmatpush1.xpose.msra.mxu0 %v91
  %132 = vmatprep.subr.mxu0 0.0
  %133 = vmatpush1.xpose.msra.mxu0 %v94
  %134 = vmatprep.subr.mxu0 0.0
  %135 = vmatpush1.xpose.msra.mxu0 %v97
  %136 = vmatprep.subr.mxu0 0.0
  %137 = vmatpush1.xpose.msra.mxu0 %v100
  %138 = vmatprep.subr.mxu0 0.0
  %139 = vmatpush1.xpose.msra.mxu0 %v103
  %140 = vmatprep.subr.mxu0 0.0
  %141 = vmatpush1.xpose.msra.mxu0 %v106
  %142 = vmatprep.subr.mxu0 0.0
  %143 = vmatpush1.xpose.msra.mxu0 %v109
  %144 = vmatprep.subr.mxu0 0.0
  %145 = vmatpush1.xpose.msra.mxu0 %v112
  %146 = vmatprep.subr.mxu0 0.0
  %147 = vmatpush1.xpose.msra.mxu0 0.0
  %148 = vmatprep.subr.mxu0 0.0
  %149 = vmatpush1.xpose.msra.mxu0 0.0
  %150 = vmatprep.subr.mxu0 0.0
  %151 = vmatpush1.xpose.msra.mxu0 0.0
  %152 = vmatprep.subr.mxu0 0.0
  %153 = vmatpush1.xpose.msra.mxu0 0.0
  %154 = vmatprep.subr.mxu0 0.0
  %155 = vmatpush1.xpose.msra.mxu0 0.0
  %156 = vmatprep.subr.mxu0 0.0
  %157 = vmatpush1.xpose.msra.mxu0 0.0
  %158 = vmatprep.subr.mxu0 0.0
  %159 = vmatpush1.xpose.msra.mxu0 0.0
  %160 = vmatprep.subr.mxu0 0.0
  %161 = vmatpush1.xpose.msra.mxu0 0.0
  %162 = vmatprep.subr.mxu0 0.0
  %163 = vmatpush1.xpose.msra.mxu0 0.0
  %164 = vmatprep.subr.mxu0 0.0
  %165 = vmatpush1.xpose.msra.mxu0 0.0
  %166 = vmatprep.subr.mxu0 0.0
  %167 = vmatpush1.xpose.msra.mxu0 0.0
  %168 = vmatprep.subr.mxu0 0.0
  %169 = vmatpush1.xpose.msra.mxu0 0.0
  %170 = vmatprep.subr.mxu0 0.0
  %171 = vmatpush1.xpose.msra.mxu0 0.0
  %172 = vmatprep.subr.mxu0 0.0
  %173 = vmatpush1.xpose.msra.mxu0 0.0
  %174 = vmatprep.subr.mxu0 0.0
  %175 = vmatpush1.xpose.msra.mxu0 0.0
  %176 = vmatprep.subr.mxu0 0.0
  %177 = vmatpush1.xpose.msra.mxu0 0.0
  %178 = vmatprep.mubr.f32.mxu0 0.0
  %179 = vmatmul.mubr.f32.gmra.mrb[0].mxu0 %v64
  %v180 = vpop.f32.mrb[0].mxu0
  %v181 = vadd.f32 0.0, %v180
  %v182 = vpop.f32.mrb[0].mxu0
  %183 = vdwg.mxu0
  %v184 = vsub.f32 0.0, %v181
  %v185 = vmin.f32 %v184, 0.0
  %v186 = vand.u32 2147483647, %v184
  %v187 = vsub.f32 0.0, %v186
  %v188 = vmul.f32 %v187, 1.442695
  %v189 = vpow.pop %v188
  %v190 = vadd.f32 %v189, 1.0
  %v191 = vlog2.pop %v190
  %v192 = vmul.f32 %v191, 0.6931472
  %v193 = vmul.f32 -0.5, %v189
  %v194 = vadd.f32 %v193, 1.0
  %v195 = vmul.f32 %v194, %v189
  %v196 = vand.u32 2147483647, %v189
  %vm197 = vcmp.lt.f32.partialorder %v196, 0.0004427343
  %v198 = vsel %vm197, %v195, %v192
  %v199 = vsub.f32 %v185, %v198
  %v200 = vlaneseq
  %v201 = vand.u32 %v200, 127
  %s202 = smul.u32 0, 128
  %v203 = vstv %s202
  %v204 = vadd.s32 %v201, %v203
  %vm205 = vcmp.lt.s32.totalorder %v204, 16
  %v206 = vsel %vm205, %v199, 0.0
  %v207 = vld [vmem:[#allocation2] sm:$0xff]
  %208 = vadd.xlane.f32.xlu0 %v206
  %v209 = vpop.xlane.xlu0 %208
  %v210 = vadd.f32 %v207, %v209
  %vm211 = vcmask 7168
  %212 = vst.msk [vmem:[#allocation2] sm:$0xff] %vm211, %v210
  // Predicated region
  $region18: #{tpu_custom_call.1} parent=0 // pred_check
    %p213 = pneg %p16
  $region19: #{tpu_custom_call.1} parent=0 // pred_check_branch
    %215 = sbr.rel (%p213) target = $region21
  $region20: #{tpu_custom_call.1} parent=0 // pred_region
    %v216 = vld [vmem:[#allocation2] sm:$0xff]
    %v217 = vmul.f32 %v216, 0.0625
    %218 = vst.msk [vmem:[%s4] sm:$0xff] %vm211, %v217
  $region21: #{tpu_custom_call.1} parent=0 // pred_fallthru
    _
  // Predicated region
  $region22: #{tpu_custom_call.1} parent=0 // pred_check
    _
  $region23: #{tpu_custom_call.1} parent=0 // pred_check_branch
    %220 = sbr.rel (0) target = $region25
  $region24: #{tpu_custom_call.1} parent=0 // pred_region
    _
  $region25: #{tpu_custom_call.1} parent=0 // pred_fallthru
    _
  // Predicated region
  $region26: #{tpu_custom_call.1} parent=0 // pred_check
    _
  $region27: #{tpu_custom_call.1} parent=0 // pred_check_branch
    %222 = sbr.rel (0) target = $region29
  $region28: #{tpu_custom_call.1} parent=0 // pred_region
    _
  $region29: #{tpu_custom_call.1} parent=0 // pred_fallthru
    _
  // Predicated region
  $region30: #{tpu_custom_call.1} parent=0 // pred_check
    _
  $region31: #{tpu_custom_call.1} parent=0 // pred_check_branch
    %224 = sbr.rel (0) target = $region33
  $region32: #{tpu_custom_call.1} parent=0 // pred_region
    _
  $region33: #{tpu_custom_call.1} parent=0 // pred_fallthru
    _
  // Predicated region
  $region34: #{tpu_custom_call.1} parent=0 // pred_check
    _
  $region35: #{tpu_custom_call.1} parent=0 // pred_check_branch
    %226 = sbr.rel (0) target = $region37
  $region36: #{tpu_custom_call.1} parent=0 // pred_region
    _
  $region37: #{tpu_custom_call.1} parent=0 // pred_fallthru
    _

</llo_original>
